<compile_context>
chip_gen: v7x
topology: tpu7x:2x2x1
jax: 0.10.0
libtpu: 0.0.40
codegen_flags: <defaults>
</compile_context>

<pallas_src>
import jax
import jax.numpy as jnp
from jax.experimental import pallas as pl
from jax.experimental.pallas import tpu as pltpu


def _round_up(x: int, m: int) -> int:
    return (x + m - 1) // m * m


def _cdiv(a: int, b: int) -> int:
    return -(-a // b)


def _choose_tm(n_rows: int, tm_max: int) -> int:
    """Row-tile size: multiple of 8, <= round_up(n_rows, 8), and giving an even
    grid (>= 2 tiles when possible) so v7x's 2 TensorCores split evenly."""
    tm_max = max(8, min(tm_max, _round_up(n_rows, 8)))
    n_tiles = _cdiv(n_rows, tm_max)
    if n_tiles > 1 and n_tiles % 2 == 1:
        n_tiles += 1
    return max(8, _round_up(_cdiv(n_rows, n_tiles), 8))


def _cxcywh_to_xyxy(b):
    cx, cy, w, h = b[..., 0], b[..., 1], b[..., 2], b[..., 3]
    return jnp.stack([cx - 0.5 * w, cy - 0.5 * h, cx + 0.5 * w, cy + 0.5 * h], -1)


def make_cost_kernel(cost_class_w: float, cost_bbox_w: float,
                     cost_giou_w: float, focal_alpha: float):
    """Builds the Pallas kernel computing one [TM, T_pad] cost-matrix tile."""

    def kernel(logits_ref, pred_ext_ref, tgt_ext_ref, lmapT_ref, out_ref):
        pe = pred_ext_ref[...].astype(jnp.float32)               # [TM, 8]
        te = tgt_ext_ref[...].astype(jnp.float32)                # [8, Tp]

        # ---- L1 bbox cost (cdist p=1) -> running accumulator C -------------
        C = jnp.abs(pe[:, 0:1] - te[0:1, :])
        for k in range(1, 4):
            C = C + jnp.abs(pe[:, k:k + 1] - te[k:k + 1, :])
        C = cost_bbox_w * C

        # ---- focal classification cost (EUP + MXU) --------------------------
        # log-sigmoid identity:  p = sigmoid(x) = 1/(1+e),  e = exp(-x)
        #     -log(p)     = log(1+e)
        #     -log(1 - p) = x + log(1+e)
        # gamma == 2.0 (hard-coded in the module) -> explicit squares.
        x = logits_ref[...].astype(jnp.float32)                  # [TM, C]
        xc = jnp.clip(x, -30.0, 30.0)                            # keep exp finite
        e = jnp.exp(-xc)
        p = pl.reciprocal(1.0 + e, approx=True)                  # EUP, not VPU div
        nlog_p = jnp.log(1.0 + e)                                # -log(sigmoid)
        nlog_1mp = xc + nlog_p                                   # -log(1-sigmoid)
        diff = (focal_alpha * ((1.0 - p) * (1.0 - p)) * nlog_p
                - (1.0 - focal_alpha) * (p * p) * nlog_1mp)      # pos - neg
        # bf16 operands -> single-pass MXU matmul, f32 accumulate.
        C = C + cost_class_w * jnp.dot(diff.astype(jnp.bfloat16), lmapT_ref[...],
                                       preferred_element_type=jnp.float32)

        # ---- GIoU cost (corners precomputed host-side) ----------------------
        o_x0, o_y0, o_x1, o_y1 = pe[:, 4:5], pe[:, 5:6], pe[:, 6:7], pe[:, 7:8]
        t_x0, t_y0, t_x1, t_y1 = te[4:5, :], te[5:6, :], te[6:7, :], te[7:8, :]

        inter = (jnp.maximum(jnp.minimum(o_x1, t_x1) - jnp.maximum(o_x0, t_x0), 0.0)
                 * jnp.maximum(jnp.minimum(o_y1, t_y1) - jnp.maximum(o_y0, t_y0), 0.0))
        union = ((o_x1 - o_x0) * (o_y1 - o_y0)
                 + (t_x1 - t_x0) * (t_y1 - t_y0) - inter)
        giou = inter * pl.reciprocal(union, approx=True)
        enc = ((jnp.maximum(o_x1, t_x1) - jnp.minimum(o_x0, t_x0))
               * (jnp.maximum(o_y1, t_y1) - jnp.minimum(o_y0, t_y0)))
        giou = giou - (enc - union) * pl.reciprocal(enc, approx=True)
        C = C - cost_giou_w * giou

        # ---- nan/inf cleanup (must stay after GIoU subtraction) -------------
        # |C| < inf is False for both inf and nan -> single-compare isfinite.
        out_ref[...] = jnp.where(jnp.abs(C) < jnp.inf, C, 0.0)

    return kernel


def pallas_cost_matrix(logits, pred_ext, tgt_ext_p, lmapT_p,
                       cost_class_w, cost_bbox_w, cost_giou_w, focal_alpha,
                       tm):
    """Cost matrix [N, T_pad]. T_pad % 128 == 0; N may be ragged w.r.t. tm
    (Pallas masks the last tile)."""
    N, C = logits.shape
    T_pad = lmapT_p.shape[1]
    assert tm % 8 == 0 and T_pad % 128 == 0

    kernel = make_cost_kernel(cost_class_w, cost_bbox_w, cost_giou_w, focal_alpha)

    grid_spec = pltpu.PrefetchScalarGridSpec(
        num_scalar_prefetch=0,
        grid=(pl.cdiv(N, tm),),
        in_specs=[
            pl.BlockSpec((tm, C), lambda i: (i, 0)),        # logits tile (native dtype)
            pl.BlockSpec((tm, 8), lambda i: (i, 0)),        # pred cxcywh + xyxy
            pl.BlockSpec((8, T_pad), lambda i: (0, 0)),     # tgt  cxcywh + xyxy
            pl.BlockSpec((C, T_pad), lambda i: (0, 0)),     # normalized label map^T (bf16)
        ],
        out_specs=pl.BlockSpec((tm, T_pad), lambda i: (i, 0)),
    )

    cost_estimate = pl.CostEstimate(
        flops=2 * N * C * T_pad + 60 * N * T_pad + 14 * N * C,
        transcendentals=3 * N * C + 2 * N * T_pad,
        bytes_accessed=(N * C * logits.dtype.itemsize
                        + N * 8 * 4
                        + 8 * T_pad * 4
                        + C * T_pad * lmapT_p.dtype.itemsize
                        + N * T_pad * 4),
    )

    return pl.pallas_call(
        kernel,
        out_shape=jax.ShapeDtypeStruct((N, T_pad), jnp.float32),
        grid_spec=grid_spec,
        compiler_params=pltpu.CompilerParams(
            dimension_semantics=("parallel",),
            vmem_limit_bytes=32 * 1024 * 1024),
        cost_estimate=cost_estimate,
    )(logits, pred_ext, tgt_ext_p, lmapT_p)


def hungarian_matcher_forward(pred_logits, pred_boxes, tgt_labels_list,
                              tgt_boxes_list, label_map,
                              cost_class=1.0, cost_bbox=1.0, cost_giou=1.0,
                              focal_alpha=0.25, tm=256):
    """JAX/Pallas port of HungarianMatcher.forward.

    Returns list of (idx_pred, idx_tgt) int32 index arrays per batch element
    (PyTorch returns int64; int32 is used here on TPU), plus the cost tensor.
    """
    bs, nq, num_classes = pred_logits.shape
    N = bs * nq
    # Keep native dtype (e.g. bf16 logits stay bf16 in HBM); kernel upcasts per tile.
    logits_flat = pred_logits.reshape(N, num_classes)
    bbox_flat = pred_boxes.reshape(N, 4).astype(jnp.float32)

    tgt_ids = jnp.concatenate(tgt_labels_list, axis=0)          # [T]
    tgt_bbox = jnp.concatenate(tgt_boxes_list, axis=0).astype(jnp.float32)  # [T,4]
    T = int(tgt_bbox.shape[0])

    new_label_map = label_map[tgt_ids]                          # [T, C]
    norm_map = new_label_map / new_label_map.sum(axis=1, keepdims=True)
    lmapT = norm_map.T                                          # [C, T]

    # Precompute xyxy corners once host-side; kernel only does cross [N,T] math.
    pred_ext = jnp.concatenate([bbox_flat, _cxcywh_to_xyxy(bbox_flat)], axis=1)  # [N, 8]
    tgt_ext = jnp.concatenate([tgt_bbox, _cxcywh_to_xyxy(tgt_bbox)], axis=1).T   # [8, T]

    # Lane-dense T padding: 128, or 256 when the text-token dim is MXU-visible
    # (>=256) so the class matmul fills the 256-wide MXU on v6e/v7x.
    granule = 256 if num_classes >= 256 else 128
    T_pad = max(granule, _round_up(T, granule))

    tgt_ext_p = jnp.pad(tgt_ext, ((0, 0), (0, T_pad - T)))
    lmapT_p = jnp.pad(lmapT, ((0, 0), (0, T_pad - T))).astype(jnp.bfloat16)

    tm_eff = _choose_tm(N, tm)

    cost_full = pallas_cost_matrix(logits_flat, pred_ext, tgt_ext_p, lmapT_p,
                                   cost_class, cost_bbox, cost_giou,
                                   focal_alpha, tm=tm_eff)
    C3 = cost_full[:, :T].reshape(bs, nq, T)

    # Assignment: fallback path of the reference module (argmin over queries).
    sizes = [int(b.shape[0]) for b in tgt_boxes_list]
    indices = []
    off = 0
    for i, sz in enumerate(sizes):
        c = C3[i, :, off:off + sz]                              # [nq, sz]
        idx_i = jnp.argmin(c, axis=0).astype(jnp.int32)
        idx_j = jnp.arange(sz, dtype=jnp.int32)
        indices.append((idx_i, idx_j))
        off += sz
    return indices, C3


def reference_cost_matrix(logits_flat, bbox_flat, tgt_bbox, norm_map,
                          cost_class, cost_bbox_w, cost_giou_w, alpha):
    """Pure-JAX reference of the cost-matrix math (faithful to the PyTorch
    module, incl. the 1e-8 log guards and exact divides), for verification."""
    prob = jax.nn.sigmoid(logits_flat.astype(jnp.float32))
    neg = (1 - alpha) * prob ** 2 * (-jnp.log(1 - prob + 1e-8))
    pos = alpha * (1 - prob) ** 2 * (-jnp.log(prob + 1e-8))
    cost_cls = (pos - neg) @ norm_map.T
    cost_l1 = jnp.abs(bbox_flat[:, None, :] - tgt_bbox[None, :, :]).sum(-1)

    b1, b2 = _cxcywh_to_xyxy(bbox_flat), _cxcywh_to_xyxy(tgt_bbox)
    area1 = (b1[:, 2] - b1[:, 0]) * (b1[:, 3] - b1[:, 1])
    area2 = (b2[:, 2] - b2[:, 0]) * (b2[:, 3] - b2[:, 1])
    lt = jnp.maximum(b1[:, None, :2], b2[None, :, :2])
    rb = jnp.minimum(b1[:, None, 2:], b2[None, :, 2:])
    wh = jnp.clip(rb - lt, 0.0)
    inter = wh[..., 0] * wh[..., 1]
    union = area1[:, None] + area2[None, :] - inter
    iou = inter / union
    lte = jnp.minimum(b1[:, None, :2], b2[None, :, :2])
    rbe = jnp.maximum(b1[:, None, 2:], b2[None, :, 2:])
    whe = jnp.clip(rbe - lte, 0.0)
    enc = whe[..., 0] * whe[..., 1]
    giou = iou - (enc - union) / enc
    C = cost_bbox_w * cost_l1 + cost_class * cost_cls + cost_giou_w * (-giou)
    return jnp.where(jnp.isnan(C) | jnp.isinf(C), 0.0, C)


if __name__ == "__main__":
    key = jax.random.PRNGKey(0)
    bs, nq, num_classes = 2, 16, 32
    num_labels = 8
    sizes = [3, 5]

    k1, k2, k3, k4, k5, k6 = jax.random.split(key, 6)
    pred_logits = jax.random.normal(k1, (bs, nq, num_classes), jnp.float32)
    # boxes in cxcywh, all components in (0, 1)
    pred_boxes = jax.nn.sigmoid(jax.random.normal(k2, (bs, nq, 4), jnp.float32))

    tgt_labels_list = [
        jax.random.randint(k3, (sizes[0],), 0, num_labels, dtype=jnp.int32),
        jax.random.randint(k4, (sizes[1],), 0, num_labels, dtype=jnp.int32),
    ]
    tgt_boxes_list = [
        jax.nn.sigmoid(jax.random.normal(k5, (sizes[0], 4), jnp.float32)),
        jax.nn.sigmoid(jax.random.normal(k6, (sizes[1], 4), jnp.float32)),
    ]

    # Deterministic binary label map: label l -> 4 consecutive text tokens.
    label_map = jnp.zeros((num_labels, num_classes), jnp.float32)
    for l in range(num_labels):
        label_map = label_map.at[l, 4 * l:4 * l + 4].set(1.0)

    indices, C3 = hungarian_matcher_forward(
        pred_logits, pred_boxes, tgt_labels_list, tgt_boxes_list, label_map,
        cost_class=1.0, cost_bbox=1.0, cost_giou=1.0, focal_alpha=0.25)
    jax.block_until_ready(C3)
    for i, j in indices:
        jax.block_until_ready(i)
        jax.block_until_ready(j)

    # Verify the Pallas cost matrix against the pure-JAX reference.
    # Tolerance accounts for (a) bf16 MXU operands in the class cost,
    # (b) EUP approximate reciprocals (sigmoid, IoU, GIoU), and (c) dropping
    # the analytically-unnecessary 1e-8 log guards.
    tgt_ids = jnp.concatenate(tgt_labels_list)
    tgt_bbox = jnp.concatenate(tgt_boxes_list)
    nm = label_map[tgt_ids]
    nm = nm / nm.sum(axis=1, keepdims=True)
    C_ref = reference_cost_matrix(
        pred_logits.reshape(bs * nq, num_classes),
        pred_boxes.reshape(bs * nq, 4),
        tgt_bbox, nm, 1.0, 1.0, 1.0, 0.25).reshape(bs, nq, -1)
    assert jnp.allclose(C3, C_ref, atol=2e-2, rtol=1e-2), "mismatch vs reference"

    print("KERNEL_OK")
</pallas_src>

<mosaic_0001>
module attributes {stable_mosaic.version = 11 : i64} {
  func.func @kernel(%arg0: i32, %arg1: memref<32x32xf32, #tpu.memory_space<vmem>>, %arg2: memref<32x8xf32, #tpu.memory_space<vmem>>, %arg3: memref<8x128xf32, #tpu.memory_space<vmem>>, %arg4: memref<32x128xbf16, #tpu.memory_space<vmem>>, %arg5: memref<32x128xf32, #tpu.memory_space<vmem>>) attributes {dimension_semantics = [#tpu.dimension_semantics<parallel>], iteration_bounds = array<i64: 1>, scalar_prefetch = 0 : i64, scratch_operands = 0 : i64, tpu.core_type = #tpu.core_type<tc>, window_params = [{transform_indices = @transform_0, window_bounds = array<i64: 32, 32>}, {transform_indices = @transform_1, window_bounds = array<i64: 32, 8>}, {pipeline_mode = #tpu.pipeline_mode<synchronous>, transform_indices = @transform_2, window_bounds = array<i64: 8, 128>}, {pipeline_mode = #tpu.pipeline_mode<synchronous>, transform_indices = @transform_3, window_bounds = array<i64: 32, 128>}, {transform_indices = @transform_4, window_bounds = array<i64: 32, 128>}]} {
    %c0 = arith.constant 0 : index
    %c0_0 = arith.constant 0 : index
    %0 = vector.load %arg2[%c0, %c0_0] : memref<32x8xf32, #tpu.memory_space<vmem>>, vector<32x8xf32>
    %c0_1 = arith.constant 0 : index
    %c0_2 = arith.constant 0 : index
    %1 = vector.load %arg3[%c0_1, %c0_2] : memref<8x128xf32, #tpu.memory_space<vmem>>, vector<8x128xf32>
    %2 = vector.extract_strided_slice %0 {offsets = [0, 0], sizes = [32, 1], strides = [1, 1]} : vector<32x8xf32> to vector<32x1xf32>
    %3 = vector.extract_strided_slice %1 {offsets = [0, 0], sizes = [1, 128], strides = [1, 1]} : vector<8x128xf32> to vector<1x128xf32>
    %4 = vector.broadcast %2 : vector<32x1xf32> to vector<32x128xf32>
    %5 = vector.broadcast %3 : vector<1x128xf32> to vector<32x128xf32>
    %6 = arith.subf %4, %5 : vector<32x128xf32>
    %7 = math.absf %6 : vector<32x128xf32>
    %8 = vector.extract_strided_slice %0 {offsets = [0, 1], sizes = [32, 1], strides = [1, 1]} : vector<32x8xf32> to vector<32x1xf32>
    %9 = vector.extract_strided_slice %1 {offsets = [1, 0], sizes = [1, 128], strides = [1, 1]} : vector<8x128xf32> to vector<1x128xf32>
    %10 = vector.broadcast %8 : vector<32x1xf32> to vector<32x128xf32>
    %11 = vector.broadcast %9 : vector<1x128xf32> to vector<32x128xf32>
    %12 = arith.subf %10, %11 : vector<32x128xf32>
    %13 = math.absf %12 : vector<32x128xf32>
    %14 = arith.addf %7, %13 : vector<32x128xf32>
    %15 = vector.extract_strided_slice %0 {offsets = [0, 2], sizes = [32, 1], strides = [1, 1]} : vector<32x8xf32> to vector<32x1xf32>
    %16 = vector.extract_strided_slice %1 {offsets = [2, 0], sizes = [1, 128], strides = [1, 1]} : vector<8x128xf32> to vector<1x128xf32>
    %17 = vector.broadcast %15 : vector<32x1xf32> to vector<32x128xf32>
    %18 = vector.broadcast %16 : vector<1x128xf32> to vector<32x128xf32>
    %19 = arith.subf %17, %18 : vector<32x128xf32>
    %20 = math.absf %19 : vector<32x128xf32>
    %21 = arith.addf %14, %20 : vector<32x128xf32>
    %22 = vector.extract_strided_slice %0 {offsets = [0, 3], sizes = [32, 1], strides = [1, 1]} : vector<32x8xf32> to vector<32x1xf32>
    %23 = vector.extract_strided_slice %1 {offsets = [3, 0], sizes = [1, 128], strides = [1, 1]} : vector<8x128xf32> to vector<1x128xf32>
    %24 = vector.broadcast %22 : vector<32x1xf32> to vector<32x128xf32>
    %25 = vector.broadcast %23 : vector<1x128xf32> to vector<32x128xf32>
    %26 = arith.subf %24, %25 : vector<32x128xf32>
    %27 = math.absf %26 : vector<32x128xf32>
    %28 = arith.addf %21, %27 : vector<32x128xf32>
    %cst = arith.constant 1.000000e+00 : f32
    %29 = vector.broadcast %cst : f32 to vector<32x128xf32>
    %30 = arith.mulf %29, %28 : vector<32x128xf32>
    %c0_3 = arith.constant 0 : index
    %c0_4 = arith.constant 0 : index
    %31 = vector.load %arg1[%c0_3, %c0_4] : memref<32x32xf32, #tpu.memory_space<vmem>>, vector<32x32xf32>
    %cst_5 = arith.constant -3.000000e+01 : f32
    %cst_6 = arith.constant 3.000000e+01 : f32
    %32 = vector.broadcast %cst_5 : f32 to vector<32x32xf32>
    %33 = arith.maximumf %32, %31 : vector<32x32xf32>
    %34 = vector.broadcast %cst_6 : f32 to vector<32x32xf32>
    %35 = arith.minimumf %34, %33 : vector<32x32xf32>
    %cst_7 = arith.constant 0.000000e+00 : f32
    %36 = vector.broadcast %cst_7 : f32 to vector<32x32xf32>
    %37 = arith.subf %36, %35 : vector<32x32xf32>
    %38 = math.exp %37 : vector<32x32xf32>
    %cst_8 = arith.constant 1.000000e+00 : f32
    %39 = vector.broadcast %cst_8 : f32 to vector<32x32xf32>
    %40 = arith.addf %39, %38 : vector<32x32xf32>
    %41 = tpu.reciprocal %40 {approx = true} : vector<32x32xf32> -> vector<32x32xf32>
    %cst_9 = arith.constant 1.000000e+00 : f32
    %42 = vector.broadcast %cst_9 : f32 to vector<32x32xf32>
    %43 = arith.addf %42, %38 : vector<32x32xf32>
    %44 = math.log %43 : vector<32x32xf32>
    %45 = arith.addf %35, %44 : vector<32x32xf32>
    %cst_10 = arith.constant 1.000000e+00 : f32
    %46 = vector.broadcast %cst_10 : f32 to vector<32x32xf32>
    %47 = arith.subf %46, %41 : vector<32x32xf32>
    %cst_11 = arith.constant 1.000000e+00 : f32
    %48 = vector.broadcast %cst_11 : f32 to vector<32x32xf32>
    %49 = arith.subf %48, %41 : vector<32x32xf32>
    %50 = arith.mulf %47, %49 : vector<32x32xf32>
    %cst_12 = arith.constant 2.500000e-01 : f32
    %51 = vector.broadcast %cst_12 : f32 to vector<32x32xf32>
    %52 = arith.mulf %51, %50 : vector<32x32xf32>
    %53 = arith.mulf %52, %44 : vector<32x32xf32>
    %54 = arith.mulf %41, %41 : vector<32x32xf32>
    %cst_13 = arith.constant 7.500000e-01 : f32
    %55 = vector.broadcast %cst_13 : f32 to vector<32x32xf32>
    %56 = arith.mulf %55, %54 : vector<32x32xf32>
    %57 = arith.mulf %56, %45 : vector<32x32xf32>
    %58 = arith.subf %53, %57 : vector<32x32xf32>
    %59 = arith.truncf %58 : vector<32x32xf32> to vector<32x32xbf16>
    %c0_14 = arith.constant 0 : index
    %c0_15 = arith.constant 0 : index
    %60 = vector.load %arg4[%c0_14, %c0_15] : memref<32x128xbf16, #tpu.memory_space<vmem>>, vector<32x128xbf16>
    %cst_16 = arith.constant dense<0.000000e+00> : vector<32x128xf32>
    %61 = tpu.matmul %59, %60, %cst_16 {dimension_numbers = #tpu.dot_dimension_numbers<[1], [0], [0], [1], [0, 0, 1, 1], [], []>} : vector<32x32xbf16>, vector<32x128xbf16>, vector<32x128xf32> -> vector<32x128xf32>
    %cst_17 = arith.constant 1.000000e+00 : f32
    %62 = vector.broadcast %cst_17 : f32 to vector<32x128xf32>
    %63 = arith.mulf %62, %61 : vector<32x128xf32>
    %64 = arith.addf %30, %63 : vector<32x128xf32>
    %65 = vector.extract_strided_slice %0 {offsets = [0, 4], sizes = [32, 1], strides = [1, 1]} : vector<32x8xf32> to vector<32x1xf32>
    %66 = vector.extract_strided_slice %0 {offsets = [0, 5], sizes = [32, 1], strides = [1, 1]} : vector<32x8xf32> to vector<32x1xf32>
    %67 = vector.extract_strided_slice %0 {offsets = [0, 6], sizes = [32, 1], strides = [1, 1]} : vector<32x8xf32> to vector<32x1xf32>
    %68 = vector.extract_strided_slice %0 {offsets = [0, 7], sizes = [32, 1], strides = [1, 1]} : vector<32x8xf32> to vector<32x1xf32>
    %69 = vector.extract_strided_slice %1 {offsets = [4, 0], sizes = [1, 128], strides = [1, 1]} : vector<8x128xf32> to vector<1x128xf32>
    %70 = vector.extract_strided_slice %1 {offsets = [5, 0], sizes = [1, 128], strides = [1, 1]} : vector<8x128xf32> to vector<1x128xf32>
    %71 = vector.extract_strided_slice %1 {offsets = [6, 0], sizes = [1, 128], strides = [1, 1]} : vector<8x128xf32> to vector<1x128xf32>
    %72 = vector.extract_strided_slice %1 {offsets = [7, 0], sizes = [1, 128], strides = [1, 1]} : vector<8x128xf32> to vector<1x128xf32>
    %73 = vector.broadcast %67 : vector<32x1xf32> to vector<32x128xf32>
    %74 = vector.broadcast %71 : vector<1x128xf32> to vector<32x128xf32>
    %75 = arith.minimumf %73, %74 : vector<32x128xf32>
    %76 = vector.broadcast %65 : vector<32x1xf32> to vector<32x128xf32>
    %77 = vector.broadcast %69 : vector<1x128xf32> to vector<32x128xf32>
    %78 = arith.maximumf %76, %77 : vector<32x128xf32>
    %79 = arith.subf %75, %78 : vector<32x128xf32>
    %cst_18 = arith.constant 0.000000e+00 : f32
    %80 = vector.broadcast %cst_18 : f32 to vector<32x128xf32>
    %81 = arith.maximumf %79, %80 : vector<32x128xf32>
    %82 = vector.broadcast %68 : vector<32x1xf32> to vector<32x128xf32>
    %83 = vector.broadcast %72 : vector<1x128xf32> to vector<32x128xf32>
    %84 = arith.minimumf %82, %83 : vector<32x128xf32>
    %85 = vector.broadcast %66 : vector<32x1xf32> to vector<32x128xf32>
    %86 = vector.broadcast %70 : vector<1x128xf32> to vector<32x128xf32>
    %87 = arith.maximumf %85, %86 : vector<32x128xf32>
    %88 = arith.subf %84, %87 : vector<32x128xf32>
    %cst_19 = arith.constant 0.000000e+00 : f32
    %89 = vector.broadcast %cst_19 : f32 to vector<32x128xf32>
    %90 = arith.maximumf %88, %89 : vector<32x128xf32>
    %91 = arith.mulf %81, %90 : vector<32x128xf32>
    %92 = arith.subf %67, %65 : vector<32x1xf32>
    %93 = arith.subf %68, %66 : vector<32x1xf32>
    %94 = arith.mulf %92, %93 : vector<32x1xf32>
    %95 = arith.subf %71, %69 : vector<1x128xf32>
    %96 = arith.subf %72, %70 : vector<1x128xf32>
    %97 = arith.mulf %95, %96 : vector<1x128xf32>
    %98 = vector.broadcast %94 : vector<32x1xf32> to vector<32x128xf32>
    %99 = vector.broadcast %97 : vector<1x128xf32> to vector<32x128xf32>
    %100 = arith.addf %98, %99 : vector<32x128xf32>
    %101 = arith.subf %100, %91 : vector<32x128xf32>
    %102 = tpu.reciprocal %101 {approx = true} : vector<32x128xf32> -> vector<32x128xf32>
    %103 = arith.mulf %91, %102 : vector<32x128xf32>
    %104 = vector.broadcast %67 : vector<32x1xf32> to vector<32x128xf32>
    %105 = vector.broadcast %71 : vector<1x128xf32> to vector<32x128xf32>
    %106 = arith.maximumf %104, %105 : vector<32x128xf32>
    %107 = vector.broadcast %65 : vector<32x1xf32> to vector<32x128xf32>
    %108 = vector.broadcast %69 : vector<1x128xf32> to vector<32x128xf32>
    %109 = arith.minimumf %107, %108 : vector<32x128xf32>
    %110 = arith.subf %106, %109 : vector<32x128xf32>
    %111 = vector.broadcast %68 : vector<32x1xf32> to vector<32x128xf32>
    %112 = vector.broadcast %72 : vector<1x128xf32> to vector<32x128xf32>
    %113 = arith.maximumf %111, %112 : vector<32x128xf32>
    %114 = vector.broadcast %66 : vector<32x1xf32> to vector<32x128xf32>
    %115 = vector.broadcast %70 : vector<1x128xf32> to vector<32x128xf32>
    %116 = arith.minimumf %114, %115 : vector<32x128xf32>
    %117 = arith.subf %113, %116 : vector<32x128xf32>
    %118 = arith.mulf %110, %117 : vector<32x128xf32>
    %119 = arith.subf %118, %101 : vector<32x128xf32>
    %120 = tpu.reciprocal %118 {approx = true} : vector<32x128xf32> -> vector<32x128xf32>
    %121 = arith.mulf %119, %120 : vector<32x128xf32>
    %122 = arith.subf %103, %121 : vector<32x128xf32>
    %cst_20 = arith.constant 1.000000e+00 : f32
    %123 = vector.broadcast %cst_20 : f32 to vector<32x128xf32>
    %124 = arith.mulf %123, %122 : vector<32x128xf32>
    %125 = arith.subf %64, %124 : vector<32x128xf32>
    %126 = math.absf %125 : vector<32x128xf32>
    %cst_21 = arith.constant 0x7F800000 : f32
    %127 = vector.broadcast %cst_21 : f32 to vector<32x128xf32>
    %128 = arith.cmpf olt, %126, %127 : vector<32x128xf32>
    %cst_22 = arith.constant 0.000000e+00 : f32
    %129 = vector.broadcast %cst_22 : f32 to vector<32x128xf32>
    %130 = arith.select %128, %125, %129 : vector<32x128xi1>, vector<32x128xf32>
    %c0_23 = arith.constant 0 : index
    %c0_24 = arith.constant 0 : index
    %131 = vector.load %arg5[%c0_23, %c0_24] : memref<32x128xf32, #tpu.memory_space<vmem>>, vector<32x128xf32>
    tpu.vector_store %arg5[%c0_23, %c0_24], %130 {strides = array<i32>} : memref<32x128xf32, #tpu.memory_space<vmem>>, vector<32x128xf32>,
    return
  }
  func.func @transform_0(%arg0: i32) -> (i32, i32) {
    %c0_i32 = arith.constant 0 : i32
    %c0_i32_0 = arith.constant 0 : i32
    return %arg0, %c0_i32 : i32, i32
  }
  func.func @transform_1(%arg0: i32) -> (i32, i32) {
    %c0_i32 = arith.constant 0 : i32
    %c0_i32_0 = arith.constant 0 : i32
    return %arg0, %c0_i32 : i32, i32
  }
  func.func @transform_2(%arg0: i32) -> (i32, i32) {
    %c0_i32 = arith.constant 0 : i32
    %c0_i32_0 = arith.constant 0 : i32
    %c0_i32_1 = arith.constant 0 : i32
    return %c0_i32, %c0_i32_0 : i32, i32
  }
  func.func @transform_3(%arg0: i32) -> (i32, i32) {
    %c0_i32 = arith.constant 0 : i32
    %c0_i32_0 = arith.constant 0 : i32
    %c0_i32_1 = arith.constant 0 : i32
    return %c0_i32, %c0_i32_0 : i32, i32
  }
  func.func @transform_4(%arg0: i32) -> (i32, i32) {
    %c0_i32 = arith.constant 0 : i32
    %c0_i32_0 = arith.constant 0 : i32
    return %arg0, %c0_i32 : i32, i32
  }
}

</mosaic_0001>

<llo_original>
// kernel: tpu_custom_call.1
$region0: #{tpu_custom_call.1}
  #allocation0 [shape = 'u32[]', space=smem, size = 0x4, offset = 0x4, fixed_abs, tag = 'smem constant byte address 0x4 - core index']
  #allocation1 [shape = 'u32[144,128]{1,0:T(1,128)}', space=vmem, size = 0x12000, scoped, tag = 'internal scratch']
  %s0 = inlined_call_operand.vmem [shape: f32[32,32], index: 0, kind: input, shape index: {}]
  %s1 = inlined_call_operand.vmem [shape: f32[32,8], index: 1, kind: input, shape index: {}]
  %s2 = inlined_call_operand.hbm [shape: f32[8,128], index: 2, kind: input, shape index: {}]
  %s3 = inlined_call_operand.vmem [shape: bf16[32,128], index: 3, kind: input, shape index: {}]
  %s4 = inlined_call_operand.hbm [shape: f32[32,128], index: 4, kind: output, shape index: {}]
  %s5 = sld [smem:[#allocation0]]
  $region30: #{tpu_custom_call.1} parent=0
    _
  %s7 = ssub.s32 1, %s5
  %s8 = scalar_select 0, %s7, %s5
  $region1: #{tpu_custom_call.1} parent=0
    #allocation2 [shape = 'u8[4096]{0}', space=vmem, size = 0x1000, scoped, tag = 'input window, operand 2, single buffered']
    #allocation3 [shape = 's32[1]{0}', space=sflag, size = 0x4, scoped, tag = 'scoped memory for tpu_custom_call.1']
    #allocation4 [shape = 's32[1]{0}', space=sflag, size = 0x4, scoped, tag = 'scoped memory for tpu_custom_call.1']
    #allocation5 [shape = 'u8[16384]{0}', space=vmem, size = 0x4000, scoped, tag = 'output window, operand 0, single buffered']
    %9 = vsyncpa [#allocation3], 0
    %10 = vsyncpa [#allocation4], 0
    // Predicated region
    $region2: #{tpu_custom_call.1} parent=1 // pred_check
      _
    $region3: #{tpu_custom_call.1} parent=1 // pred_check_branch
      %12 = sbr.rel (0) target = $region5
    $region4: #{tpu_custom_call.1} parent=1 // pred_region
      _
    $region5: #{tpu_custom_call.1} parent=1 // pred_fallthru
      _
    // Predicated region
    $region6: #{tpu_custom_call.1} parent=1 // pred_check
      _
    $region7: #{tpu_custom_call.1} parent=1 // pred_check_branch
      %14 = sbr.rel (0) target = $region9
    $region8: #{tpu_custom_call.1} parent=1 // pred_region
      _
    $region9: #{tpu_custom_call.1} parent=1 // pred_fallthru
      _
    // Predicated region
    $region10: #{tpu_custom_call.1} parent=1 // pred_check
      _
    $region11: #{tpu_custom_call.1} parent=1 // pred_check_branch
      %16 = sbr.rel (0) target = $region13
    $region12: #{tpu_custom_call.1} parent=1 // pred_region
      %s18 = ssub.s32 128, 128
      %19 = vsyncadd [#allocation3], %s18
      %s21 = sshll.u32 [#allocation2], 4
      %s22 = int_to_ptr.vmem [resolvable:$true] %s21
      %24 = dma.hbm_to_vmem [thread:$0]  %s2, 128, %s22, [#allocation3]
    $region13: #{tpu_custom_call.1} parent=1 // pred_fallthru
      _
    // Predicated region
    $region14: #{tpu_custom_call.1} parent=1 // pred_check
      _
    $region15: #{tpu_custom_call.1} parent=1 // pred_check_branch
      %26 = sbr.rel (0) target = $region17
    $region16: #{tpu_custom_call.1} parent=1 // pred_region
      _
    $region17: #{tpu_custom_call.1} parent=1 // pred_fallthru
      _
    // Predicated region
    $region18: #{tpu_custom_call.1} parent=1 // pred_check
      _
    $region19: #{tpu_custom_call.1} parent=1 // pred_check_branch
      %28 = sbr.rel (0) target = $region21
    $region20: #{tpu_custom_call.1} parent=1 // pred_region
      %29 = dma.done [#allocation3], 128
    $region21: #{tpu_custom_call.1} parent=1 // pred_fallthru
      _
    %v31 = vld [vmem:[%s1] sm:$0xff]
    %v32 = vld [vmem:[%s1 + $0x8] sm:$0xff]
    %v33 = vld [vmem:[%s1 + $0x10] sm:$0xff]
    %v34 = vld [vmem:[%s1 + $0x18] sm:$0xff]
    %v35 = vld [vmem:[#allocation2] sm:$0xff]
    %37 = vset.pattern.permute.xlu0 0
    %38 = vperm.xlu0 %37, %v31
    %v39 = vpop.permute.xlu0 %38
    %42 = vset.pattern.permute.xlu0 0
    %43 = vperm.xlu0 %42, %v32
    %v44 = vpop.permute.xlu0 %43
    %47 = vset.pattern.permute.xlu0 0
    %48 = vperm.xlu0 %47, %v33
    %v49 = vpop.permute.xlu0 %48
    %52 = vset.pattern.permute.xlu0 0
    %53 = vperm.xlu0 %52, %v34
    %v54 = vpop.permute.xlu0 %53
    %v56 = vlaneseq
    %v57 = vshrl.u32 %v56, 7
    %v58 = vsub.s32 0, %v57
    %v59 = vrot.slane %v35, %v58
    %v60 = vsub.f32 %v39, %v59
    %v61 = vsub.f32 %v44, %v59
    %v62 = vsub.f32 %v49, %v59
    %v63 = vsub.f32 %v54, %v59
    %v64 = vand.u32 2147483647, %v60
    %v65 = vand.u32 2147483647, %v61
    %v66 = vand.u32 2147483647, %v62
    %v67 = vand.u32 2147483647, %v63
    %68 = vset.pattern.permute.xlu0 1
    %69 = vperm.xlu0 %68, %v31
    %v70 = vpop.permute.xlu0 %69
    %72 = vset.pattern.permute.xlu0 1
    %73 = vperm.xlu0 %72, %v32
    %v74 = vpop.permute.xlu0 %73
    %76 = vset.pattern.permute.xlu0 1
    %77 = vperm.xlu0 %76, %v33
    %v78 = vpop.permute.xlu0 %77
    %80 = vset.pattern.permute.xlu0 1
    %81 = vperm.xlu0 %80, %v34
    %v82 = vpop.permute.xlu0 %81
    %v84 = vlaneseq
    %v85 = vshrl.u32 %v84, 7
    %v86 = vsub.s32 1, %v85
    %v87 = vrot.slane %v35, %v86
    %v88 = vsub.f32 %v70, %v87
    %v89 = vsub.f32 %v74, %v87
    %v90 = vsub.f32 %v78, %v87
    %v91 = vsub.f32 %v82, %v87
    %v92 = vand.u32 2147483647, %v88
    %v93 = vand.u32 2147483647, %v89
    %v94 = vand.u32 2147483647, %v90
    %v95 = vand.u32 2147483647, %v91
    %v96 = vadd.f32 %v64, %v92
    %v97 = vadd.f32 %v65, %v93
    %v98 = vadd.f32 %v66, %v94
    %v99 = vadd.f32 %v67, %v95
    %100 = vset.pattern.permute.xlu0 2
    %101 = vperm.xlu0 %100, %v31
    %v102 = vpop.permute.xlu0 %101
    %104 = vset.pattern.permute.xlu0 2
    %105 = vperm.xlu0 %104, %v32
    %v106 = vpop.permute.xlu0 %105
    %108 = vset.pattern.permute.xlu0 2
    %109 = vperm.xlu0 %108, %v33
    %v110 = vpop.permute.xlu0 %109
    %112 = vset.pattern.permute.xlu0 2
    %113 = vperm.xlu0 %112, %v34
    %v114 = vpop.permute.xlu0 %113
    %v116 = vlaneseq
    %v117 = vshrl.u32 %v116, 7
    %v118 = vsub.s32 2, %v117
    %v119 = vrot.slane %v35, %v118
    %v120 = vsub.f32 %v102, %v119
    %v121 = vsub.f32 %v106, %v119
    %v122 = vsub.f32 %v110, %v119
    %v123 = vsub.f32 %v114, %v119
    %v124 = vand.u32 2147483647, %v120
    %v125 = vand.u32 2147483647, %v121
    %v126 = vand.u32 2147483647, %v122
    %v127 = vand.u32 2147483647, %v123
    %v128 = vadd.f32 %v96, %v124
    %v129 = vadd.f32 %v97, %v125
    %v130 = vadd.f32 %v98, %v126
    %v131 = vadd.f32 %v99, %v127
    %132 = vset.pattern.permute.xlu0 3
    %133 = vperm.xlu0 %132, %v31
    %v134 = vpop.permute.xlu0 %133
    %136 = vset.pattern.permute.xlu0 3
    %137 = vperm.xlu0 %136, %v32
    %v138 = vpop.permute.xlu0 %137
    %140 = vset.pattern.permute.xlu0 3
    %141 = vperm.xlu0 %140, %v33
    %v142 = vpop.permute.xlu0 %141
    %144 = vset.pattern.permute.xlu0 3
    %145 = vperm.xlu0 %144, %v34
    %v146 = vpop.permute.xlu0 %145
    %v148 = vlaneseq
    %v149 = vshrl.u32 %v148, 7
    %v150 = vsub.s32 3, %v149
    %v151 = vrot.slane %v35, %v150
    %v152 = vsub.f32 %v134, %v151
    %v153 = vsub.f32 %v138, %v151
    %v154 = vsub.f32 %v142, %v151
    %v155 = vsub.f32 %v146, %v151
    %v156 = vand.u32 2147483647, %v152
    %v157 = vand.u32 2147483647, %v153
    %v158 = vand.u32 2147483647, %v154
    %v159 = vand.u32 2147483647, %v155
    %v160 = vadd.f32 %v128, %v156
    %v161 = vadd.f32 %v129, %v157
    %v162 = vadd.f32 %v130, %v158
    %v163 = vadd.f32 %v131, %v159
    %v164 = vld [vmem:[%s0] sm:$0xff]
    %v165 = vld [vmem:[%s0 + $0x8] sm:$0xff]
    %v166 = vld [vmem:[%s0 + $0x10] sm:$0xff]
    %v167 = vld [vmem:[%s0 + $0x18] sm:$0xff]
    %v168 = vmax.f32 %v164, -30.0
    %v169 = vmax.f32 %v165, -30.0
    %v170 = vmax.f32 %v166, -30.0
    %v171 = vmax.f32 %v167, -30.0
    %v172 = vmin.f32 %v168, 30.0
    %v173 = vmin.f32 %v169, 30.0
    %v174 = vmin.f32 %v170, 30.0
    %v175 = vmin.f32 %v171, 30.0
    %v176 = vsub.f32 0.0, %v172
    %v177 = vsub.f32 0.0, %v173
    %v178 = vsub.f32 0.0, %v174
    %v179 = vsub.f32 0.0, %v175
    %v180 = vmul.f32 %v176, 1.442695
    %v181 = vpow.pop %v180
    %v182 = vmul.f32 %v177, 1.442695
    %v183 = vpow.pop %v182
    %v184 = vmul.f32 %v178, 1.442695
    %v185 = vpow.pop %v184
    %v186 = vmul.f32 %v179, 1.442695
    %v187 = vpow.pop %v186
    %v188 = vadd.f32 %v181, 1.0
    %v189 = vadd.f32 %v183, 1.0
    %v190 = vadd.f32 %v185, 1.0
    %v191 = vadd.f32 %v187, 1.0
    %v192 = vrcp.pop %v188
    %v193 = vrcp.pop %v189
    %v194 = vrcp.pop %v190
    %v195 = vrcp.pop %v191
    %v196 = vlog2.pop %v188
    %v197 = vmul.f32 %v196, 0.6931472
    %v198 = vlog2.pop %v189
    %v199 = vmul.f32 %v198, 0.6931472
    %v200 = vlog2.pop %v190
    %v201 = vmul.f32 %v200, 0.6931472
    %v202 = vlog2.pop %v191
    %v203 = vmul.f32 %v202, 0.6931472
    %v204 = vadd.f32 %v172, %v197
    %v205 = vadd.f32 %v173, %v199
    %v206 = vadd.f32 %v174, %v201
    %v207 = vadd.f32 %v175, %v203
    %v208 = vsub.f32 1.0, %v192
    %v209 = vsub.f32 1.0, %v193
    %v210 = vsub.f32 1.0, %v194
    %v211 = vsub.f32 1.0, %v195
    %v212 = vmul.f32 %v208, %v208
    %v213 = vmul.f32 %v209, %v209
    %v214 = vmul.f32 %v210, %v210
    %v215 = vmul.f32 %v211, %v211
    %v216 = vmul.f32 %v212, 0.25
    %v217 = vmul.f32 %v213, 0.25
    %v218 = vmul.f32 %v214, 0.25
    %v219 = vmul.f32 %v215, 0.25
    %v220 = vmul.f32 %v216, %v197
    %v221 = vmul.f32 %v217, %v199
    %v222 = vmul.f32 %v218, %v201
    %v223 = vmul.f32 %v219, %v203
    %v224 = vmul.f32 %v192, %v192
    %v225 = vmul.f32 %v193, %v193
    %v226 = vmul.f32 %v194, %v194
    %v227 = vmul.f32 %v195, %v195
    %v228 = vmul.f32 %v224, 0.75
    %v229 = vmul.f32 %v225, 0.75
    %v230 = vmul.f32 %v226, 0.75
    %v231 = vmul.f32 %v227, 0.75
    %v232 = vmul.f32 %v228, %v204
    %v233 = vmul.f32 %v229, %v205
    %v234 = vmul.f32 %v230, %v206
    %v235 = vmul.f32 %v231, %v207
    %v236 = vsub.f32 %v220, %v232
    %v237 = vsub.f32 %v221, %v233
    %v238 = vsub.f32 %v222, %v234
    %v239 = vsub.f32 %v223, %v235
    %v240 = vpack.c.bf16 %v237, %v236
    %v241 = vpack.c.bf16 %v239, %v238
    %v242 = vld [vmem:[%s3] sm:$0xf]
    %v243 = vld [vmem:[%s3 + $0x4] sm:$0xf]
    %v244 = vld [vmem:[%s3 + $0x8] sm:$0xf]
    %v245 = vld [vmem:[%s3 + $0xc] sm:$0xf]
    %v250 = vunpack.c.l.b16 %v242
    %v251 = vunpack.c.l.b16 %v243
    %v252 = vunpack.c.l.b16 %v244
    %v253 = vunpack.c.l.b16 %v245
    %v254 = vpack.c.b16 %v251, %v250
    %v255 = vpack.c.b16 %v253, %v252
    %vm258 = vcmask 261120
    %v260 = vsel %vm258, %v240, 0
    %v263 = vsel %vm258, %v241, 0
    %265 = vmatprep.subr.bf16.mxu0 0
    %266 = vmatpush1.bf16.msra.mxu0 %v254
    %267 = vmatprep.subr.bf16.mxu0 0
    %268 = vmatpush1.bf16.msra.mxu0 %v255
    %269 = vmatprep.subr.bf16.mxu0 0
    %270 = vmatpush1.bf16.msra.mxu0 0
    %271 = vmatprep.subr.bf16.mxu0 0
    %272 = vmatpush1.bf16.msra.mxu0 0
    %273 = vmatprep.subr.bf16.mxu0 0
    %274 = vmatpush1.bf16.msra.mxu0 0
    %275 = vmatprep.subr.bf16.mxu0 0
    %276 = vmatpush1.bf16.msra.mxu0 0
    %277 = vmatprep.subr.bf16.mxu0 0
    %278 = vmatpush1.bf16.msra.mxu0 0
    %279 = vmatprep.subr.bf16.mxu0 0
    %280 = vmatpush1.bf16.msra.mxu0 0
    %281 = vmatprep.subr.bf16.mxu0 0
    %282 = vmatpush1.bf16.msra.mxu0 0
    %283 = vmatprep.subr.bf16.mxu0 0
    %284 = vmatpush1.bf16.msra.mxu0 0
    %285 = vmatprep.subr.bf16.mxu0 0
    %286 = vmatpush1.bf16.msra.mxu0 0
    %287 = vmatprep.subr.bf16.mxu0 0
    %288 = vmatpush1.bf16.msra.mxu0 0
    %289 = vmatprep.subr.bf16.mxu0 0
    %290 = vmatpush1.bf16.msra.mxu0 0
    %291 = vmatprep.subr.bf16.mxu0 0
    %292 = vmatpush1.bf16.msra.mxu0 0
    %293 = vmatprep.subr.bf16.mxu0 0
    %294 = vmatpush1.bf16.msra.mxu0 0
    %295 = vmatprep.subr.bf16.mxu0 0
    %296 = vmatpush1.bf16.msra.mxu0 0
    %297 = vmatprep.mubr.bf16.mxu0 0
    %298 = vmatmul.mubr.bf16.gmra.mrb[0].mxu0 %v260
    %v299 = vpop.f32.mrb[0].mxu0
    %v300 = vadd.f32 0.0, %v299
    %v301 = vpop.f32.mrb[0].mxu0
    %v302 = vpop.f32.mrb[0].mxu0
    %v303 = vadd.f32 0.0, %v302
    %v304 = vpop.f32.mrb[0].mxu0
    %305 = vmatprep.mubr.bf16.mxu0 0
    %306 = vmatmul.mubr.bf16.gmra.mrb[0].mxu0 %v263
    %v307 = vpop.f32.mrb[0].mxu0
    %v308 = vadd.f32 0.0, %v307
    %v309 = vpop.f32.mrb[0].mxu0
    %v310 = vpop.f32.mrb[0].mxu0
    %v311 = vadd.f32 0.0, %v310
    %v312 = vpop.f32.mrb[0].mxu0
    %313 = vdwg.mxu0
    %v314 = vadd.f32 %v160, %v300
    %v315 = vadd.f32 %v161, %v303
    %v316 = vadd.f32 %v162, %v308
    %v317 = vadd.f32 %v163, %v311
    %318 = vset.pattern.permute.xlu0 6
    %319 = vperm.xlu0 %318, %v31
    %v320 = vpop.permute.xlu0 %319
    %322 = vset.pattern.permute.xlu0 6
    %323 = vperm.xlu0 %322, %v32
    %v324 = vpop.permute.xlu0 %323
    %326 = vset.pattern.permute.xlu0 6
    %327 = vperm.xlu0 %326, %v33
    %v328 = vpop.permute.xlu0 %327
    %330 = vset.pattern.permute.xlu0 6
    %331 = vperm.xlu0 %330, %v34
    %v332 = vpop.permute.xlu0 %331
    %v334 = vlaneseq
    %v335 = vshrl.u32 %v334, 7
    %v336 = vsub.s32 6, %v335
    %v337 = vrot.slane %v35, %v336
    %v338 = vmin.f32 %v320, %v337
    %v339 = vmin.f32 %v324, %v337
    %v340 = vmin.f32 %v328, %v337
    %v341 = vmin.f32 %v332, %v337
    %342 = vset.pattern.permute.xlu0 4
    %343 = vperm.xlu0 %342, %v31
    %v344 = vpop.permute.xlu0 %343
    %346 = vset.pattern.permute.xlu0 4
    %347 = vperm.xlu0 %346, %v32
    %v348 = vpop.permute.xlu0 %347
    %350 = vset.pattern.permute.xlu0 4
    %351 = vperm.xlu0 %350, %v33
    %v352 = vpop.permute.xlu0 %351
    %354 = vset.pattern.permute.xlu0 4
    %355 = vperm.xlu0 %354, %v34
    %v356 = vpop.permute.xlu0 %355
    %v358 = vlaneseq
    %v359 = vshrl.u32 %v358, 7
    %v360 = vsub.s32 4, %v359
    %v361 = vrot.slane %v35, %v360
    %v362 = vmax.f32 %v344, %v361
    %v363 = vmax.f32 %v348, %v361
    %v364 = vmax.f32 %v352, %v361
    %v365 = vmax.f32 %v356, %v361
    %v366 = vsub.f32 %v338, %v362
    %v367 = vsub.f32 %v339, %v363
    %v368 = vsub.f32 %v340, %v364
    %v369 = vsub.f32 %v341, %v365
    %v370 = vmax.f32 %v366, 0.0
    %v371 = vmax.f32 %v367, 0.0
    %v372 = vmax.f32 %v368, 0.0
    %v373 = vmax.f32 %v369, 0.0
    %374 = vset.pattern.permute.xlu0 7
    %375 = vperm.xlu0 %374, %v31
    %v376 = vpop.permute.xlu0 %375
    %378 = vset.pattern.permute.xlu0 7
    %379 = vperm.xlu0 %378, %v32
    %v380 = vpop.permute.xlu0 %379
    %382 = vset.pattern.permute.xlu0 7
    %383 = vperm.xlu0 %382, %v33
    %v384 = vpop.permute.xlu0 %383
    %386 = vset.pattern.permute.xlu0 7
    %387 = vperm.xlu0 %386, %v34
    %v388 = vpop.permute.xlu0 %387
    %v390 = vlaneseq
    %v391 = vshrl.u32 %v390, 7
    %v392 = vsub.s32 7, %v391
    %v393 = vrot.slane %v35, %v392
    %v394 = vmin.f32 %v376, %v393
    %v395 = vmin.f32 %v380, %v393
    %v396 = vmin.f32 %v384, %v393
    %v397 = vmin.f32 %v388, %v393
    %398 = vset.pattern.permute.xlu0 5
    %399 = vperm.xlu0 %398, %v31
    %v400 = vpop.permute.xlu0 %399
    %402 = vset.pattern.permute.xlu0 5
    %403 = vperm.xlu0 %402, %v32
    %v404 = vpop.permute.xlu0 %403
    %406 = vset.pattern.permute.xlu0 5
    %407 = vperm.xlu0 %406, %v33
    %v408 = vpop.permute.xlu0 %407
    %410 = vset.pattern.permute.xlu0 5
    %411 = vperm.xlu0 %410, %v34
    %v412 = vpop.permute.xlu0 %411
    %v414 = vlaneseq
    %v415 = vshrl.u32 %v414, 7
    %v416 = vsub.s32 5, %v415
    %v417 = vrot.slane %v35, %v416
    %v418 = vmax.f32 %v400, %v417
    %v419 = vmax.f32 %v404, %v417
    %v420 = vmax.f32 %v408, %v417
    %v421 = vmax.f32 %v412, %v417
    %v422 = vsub.f32 %v394, %v418
    %v423 = vsub.f32 %v395, %v419
    %v424 = vsub.f32 %v396, %v420
    %v425 = vsub.f32 %v397, %v421
    %v426 = vmax.f32 %v422, 0.0
    %v427 = vmax.f32 %v423, 0.0
    %v428 = vmax.f32 %v424, 0.0
    %v429 = vmax.f32 %v425, 0.0
    %v430 = vmul.f32 %v370, %v426
    %v431 = vmul.f32 %v371, %v427
    %v432 = vmul.f32 %v372, %v428
    %v433 = vmul.f32 %v373, %v429
    %434 = vrot.lane.b32.xlu0 %v31, 2
    %v435 = vpop.permute.xlu0 %434
    %436 = vrot.lane.b32.xlu0 %v32, 2
    %v437 = vpop.permute.xlu0 %436
    %438 = vrot.lane.b32.xlu0 %v33, 2
    %v439 = vpop.permute.xlu0 %438
    %440 = vrot.lane.b32.xlu0 %v34, 2
    %v441 = vpop.permute.xlu0 %440
    %v446 = vsub.f32 %v31, %v435
    %v447 = vsub.f32 %v32, %v437
    %v448 = vsub.f32 %v33, %v439
    %v449 = vsub.f32 %v34, %v441
    %454 = vrot.lane.b32.xlu0 %v446, 127
    %v455 = vpop.permute.xlu0 %454
    %456 = vrot.lane.b32.xlu0 %v447, 127
    %v457 = vpop.permute.xlu0 %456
    %458 = vrot.lane.b32.xlu0 %v448, 127
    %v459 = vpop.permute.xlu0 %458
    %460 = vrot.lane.b32.xlu0 %v449, 127
    %v461 = vpop.permute.xlu0 %460
    %v466 = vmul.f32 %v446, %v455
    %v467 = vmul.f32 %v447, %v457
    %v468 = vmul.f32 %v448, %v459
    %v469 = vmul.f32 %v449, %v461
    %v471 = vrot.slane %v35, 6
    %v473 = vsub.f32 %v35, %v471
    %v475 = vrot.slane %v473, 1
    %v477 = vmul.f32 %v473, %v475
    %479 = vset.pattern.permute.xlu0 6
    %480 = vperm.xlu0 %479, %v466
    %v481 = vpop.permute.xlu0 %480
    %484 = vset.pattern.permute.xlu0 6
    %485 = vperm.xlu0 %484, %v467
    %v486 = vpop.permute.xlu0 %485
    %489 = vset.pattern.permute.xlu0 6
    %490 = vperm.xlu0 %489, %v468
    %v491 = vpop.permute.xlu0 %490
    %494 = vset.pattern.permute.xlu0 6
    %495 = vperm.xlu0 %494, %v469
    %v496 = vpop.permute.xlu0 %495
    %v498 = vlaneseq
    %v499 = vshrl.u32 %v498, 7
    %v500 = vsub.s32 6, %v499
    %v501 = vrot.slane %v477, %v500
    %v502 = vadd.f32 %v481, %v501
    %v503 = vadd.f32 %v486, %v501
    %v504 = vadd.f32 %v491, %v501
    %v505 = vadd.f32 %v496, %v501
    %v506 = vsub.f32 %v502, %v430
    %v507 = vsub.f32 %v503, %v431
    %v508 = vsub.f32 %v504, %v432
    %v509 = vsub.f32 %v505, %v433
    %v510 = vrcp.pop %v506
    %v511 = vrcp.pop %v507
    %v512 = vrcp.pop %v508
    %v513 = vrcp.pop %v509
    %v514 = vmul.f32 %v430, %v510
    %v515 = vmul.f32 %v431, %v511
    %v516 = vmul.f32 %v432, %v512
    %v517 = vmul.f32 %v433, %v513
    %v518 = vmax.f32 %v320, %v337
    %v519 = vmax.f32 %v324, %v337
    %v520 = vmax.f32 %v328, %v337
    %v521 = vmax.f32 %v332, %v337
    %v522 = vmin.f32 %v344, %v361
    %v523 = vmin.f32 %v348, %v361
    %v524 = vmin.f32 %v352, %v361
    %v525 = vmin.f32 %v356, %v361
    %v526 = vsub.f32 %v518, %v522
    %v527 = vsub.f32 %v519, %v523
    %v528 = vsub.f32 %v520, %v524
    %v529 = vsub.f32 %v521, %v525
    %v530 = vmax.f32 %v376, %v393
    %v531 = vmax.f32 %v380, %v393
    %v532 = vmax.f32 %v384, %v393
    %v533 = vmax.f32 %v388, %v393
    %v534 = vmin.f32 %v400, %v417
    %v535 = vmin.f32 %v404, %v417
    %v536 = vmin.f32 %v408, %v417
    %v537 = vmin.f32 %v412, %v417
    %v538 = vsub.f32 %v530, %v534
    %v539 = vsub.f32 %v531, %v535
    %v540 = vsub.f32 %v532, %v536
    %v541 = vsub.f32 %v533, %v537
    %v542 = vmul.f32 %v526, %v538
    %v543 = vmul.f32 %v527, %v539
    %v544 = vmul.f32 %v528, %v540
    %v545 = vmul.f32 %v529, %v541
    %v546 = vsub.f32 %v542, %v506
    %v547 = vsub.f32 %v543, %v507
    %v548 = vsub.f32 %v544, %v508
    %v549 = vsub.f32 %v545, %v509
    %v550 = vrcp.pop %v542
    %v551 = vrcp.pop %v543
    %v552 = vrcp.pop %v544
    %v553 = vrcp.pop %v545
    %v554 = vmul.f32 %v546, %v550
    %v555 = vmul.f32 %v547, %v551
    %v556 = vmul.f32 %v548, %v552
    %v557 = vmul.f32 %v549, %v553
    %v558 = vsub.f32 %v514, %v554
    %v559 = vsub.f32 %v515, %v555
    %v560 = vsub.f32 %v516, %v556
    %v561 = vsub.f32 %v517, %v557
    %v562 = vsub.f32 %v314, %v558
    %v563 = vsub.f32 %v315, %v559
    %v564 = vsub.f32 %v316, %v560
    %v565 = vsub.f32 %v317, %v561
    %v566 = vand.u32 2147483647, %v562
    %v567 = vand.u32 2147483647, %v563
    %v568 = vand.u32 2147483647, %v564
    %v569 = vand.u32 2147483647, %v565
    %vm570 = vcmp.lt.f32.partialorder %v566, inf
    %vm571 = vcmp.lt.f32.partialorder %v567, inf
    %vm572 = vcmp.lt.f32.partialorder %v568, inf
    %vm573 = vcmp.lt.f32.partialorder %v569, inf
    %v574 = vsel %vm570, %v562, 0.0
    %v575 = vsel %vm571, %v563, 0.0
    %v576 = vsel %vm572, %v564, 0.0
    %v577 = vsel %vm573, %v565, 0.0
    %578 = vst [vmem:[#allocation5] sm:$0xff] %v574
    %579 = vst [vmem:[#allocation5 + $0x8] sm:$0xff] %v575
    %580 = vst [vmem:[#allocation5 + $0x10] sm:$0xff] %v576
    %581 = vst [vmem:[#allocation5 + $0x18] sm:$0xff] %v577
    // Predicated region
    $region22: #{tpu_custom_call.1} parent=1 // pred_check
      _
    $region23: #{tpu_custom_call.1} parent=1 // pred_check_branch
      %583 = sbr.rel (0) target = $region25
    $region24: #{tpu_custom_call.1} parent=1 // pred_region
      %s585 = ssub.s32 512, 512
      %586 = vsyncadd [#allocation4], %s585
      %s587 = sshll.u32 [#allocation5], 4
      %s588 = int_to_ptr.vmem [resolvable:$true] %s587
      %593 = dma.vmem_to_hbm [thread:$0]  %s588, 512, %s4, [#allocation4], 128, 128, 8
    $region25: #{tpu_custom_call.1} parent=1 // pred_fallthru
      _
    // Predicated region
    $region26: #{tpu_custom_call.1} parent=1 // pred_check
      _
    $region27: #{tpu_custom_call.1} parent=1 // pred_check_branch
      %595 = sbr.rel (0) target = $region29
    $region28: #{tpu_custom_call.1} parent=1 // pred_region
      %596 = dma.done [#allocation4], 512
    $region29: #{tpu_custom_call.1} parent=1 // pred_fallthru
      _
    %597 = vsyncpa [#allocation3], 1
    %598 = vsyncpa [#allocation4], 1

</llo_original>
